<compile_context>
chip_gen: v6e
topology: v6e:2x2x1
jax: 0.10.0
libtpu: 0.0.40
codegen_flags: <defaults>
</compile_context>

<pallas_src>
import jax
import jax.numpy as jnp
from jax.experimental import pallas as pl
from jax.experimental.pallas import tpu as pltpu

LANE = 128
SUBLANE = 8
MAX_TILE_ROWS = 8192          # 8192 x 128 f32 = 4 MiB per block
FUSED_MAX_ROWS = 4096         # <= 2 MiB f32 slab -> fused single-call VMEM-resident path
VMEM_LIMIT = 32 * 1024 * 1024


def _cdiv(a, b):
    return -(-a // b)


def _round_up(v, m):
    return _cdiv(v, m) * m


# ---------------- Fused path: load once, reduce, shade, store ----------------
def _fused_kernel(x_ref, o_ref):
    x = x_ref[...].astype(jnp.float32)
    m = jnp.max(jnp.abs(x))          # padded zeros are harmless for max(|x|)
    scale = 0.5 / m                  # exact scalar divide, hoisted once
    o_ref[...] = (0.5 - x * scale).astype(o_ref.dtype)


# ---------------- Pass 1 (two-pass path): per-block partial max(|x|) ----------------
def _make_partial_maxabs_kernel(valid_rows, tile_rows, need_mask):
    def kernel(x_ref, o_ref):
        a = jnp.abs(x_ref[...].astype(jnp.float32))            # (tile_rows, 128)
        if need_mask:
            # Last block may extend past the array; mask stale rows (VPU filler,
            # hidden under DMA in this mem-bound kernel).
            row0 = pl.program_id(0) * tile_rows
            row_ids = jax.lax.broadcasted_iota(jnp.int32, a.shape, 0) + row0
            a = jnp.where(row_ids < valid_rows, a, 0.0)
        part = a.reshape(-1, SUBLANE, LANE).max(axis=0)          # (8, 128), pure VPU max
        o_ref[...] = part[None]                                  # (1, 8, 128)
    return kernel


# ---------------- Pass 2 (two-pass path): out = 0.5 - x * scale ----------------
def _shade_kernel(x_ref, scale_ref, o_ref):
    scale = scale_ref[0, 0]                                      # f32 scalar from SMEM
    x = x_ref[...].astype(jnp.float32)
    o_ref[...] = (0.5 - x * scale).astype(o_ref.dtype)


def _fused_call(x2d, out_dtype):
    rows_p = x2d.shape[0]
    return pl.pallas_call(
        _fused_kernel,
        out_shape=jax.ShapeDtypeStruct((rows_p, LANE), out_dtype),
        grid_spec=pltpu.PrefetchScalarGridSpec(
            num_scalar_prefetch=0,
            grid=(1,),
            in_specs=[pl.BlockSpec((rows_p, LANE), lambda i: (0, 0))],
            out_specs=pl.BlockSpec((rows_p, LANE), lambda i: (0, 0)),
        ),
        compiler_params=pltpu.CompilerParams(
            dimension_semantics=("arbitrary",),
            vmem_limit_bytes=VMEM_LIMIT,
        ),
    )(x2d)


def _two_pass_call(x2d, out_dtype, rows_p, max_tile_rows, pack_rows):
    # Ensure at least 2 grid steps so both v7x TensorCores are used on the parallel grid.
    tile_rows = min(max_tile_rows, _round_up(_cdiv(rows_p, 2), pack_rows))
    tile_rows = max(tile_rows, pack_rows)
    num_tiles = _cdiv(rows_p, tile_rows)
    need_mask = (rows_p % tile_rows) != 0

    # ---- Pass 1: per-block partial max(|x|), fully parallel ----
    partials = pl.pallas_call(
        _make_partial_maxabs_kernel(rows_p, tile_rows, need_mask),
        out_shape=jax.ShapeDtypeStruct((num_tiles, SUBLANE, LANE), jnp.float32),
        grid_spec=pltpu.PrefetchScalarGridSpec(
            num_scalar_prefetch=0,
            grid=(num_tiles,),
            in_specs=[pl.BlockSpec((tile_rows, LANE), lambda i: (i, 0))],
            out_specs=pl.BlockSpec((1, SUBLANE, LANE), lambda i: (i, 0, 0)),
        ),
        compiler_params=pltpu.CompilerParams(
            dimension_semantics=("parallel",),
            vmem_limit_bytes=VMEM_LIMIT,
        ),
    )(x2d)

    # Fold the tiny partials to a scalar and hoist the reciprocal once (exact divide).
    max_abs = jnp.max(partials)
    scale = (0.5 / max_abs).astype(jnp.float32).reshape(1, 1)

    # ---- Pass 2: elementwise shade with the scalar scale from SMEM ----
    out2d = pl.pallas_call(
        _shade_kernel,
        out_shape=jax.ShapeDtypeStruct((rows_p, LANE), out_dtype),
        grid_spec=pltpu.PrefetchScalarGridSpec(
            num_scalar_prefetch=0,
            grid=(num_tiles,),
            in_specs=[
                pl.BlockSpec((tile_rows, LANE), lambda i: (i, 0)),
                pl.BlockSpec(memory_space=pltpu.MemorySpace.SMEM),
            ],
            out_specs=pl.BlockSpec((tile_rows, LANE), lambda i: (i, 0)),
        ),
        compiler_params=pltpu.CompilerParams(
            dimension_semantics=("parallel",),
            vmem_limit_bytes=VMEM_LIMIT,
        ),
    )(x2d, scale)
    return out2d


def laplacian_shader_pallas(x, *, fused_max_rows=FUSED_MAX_ROWS,
                            max_tile_rows=MAX_TILE_ROWS):
    orig_shape = x.shape
    orig_dtype = x.dtype
    n = x.size

    # dtype-aware sublane pack: 8 (f32), 16 (bf16/f16), 32 (int8/fp8)
    itemsize = jnp.dtype(orig_dtype).itemsize
    pack_rows = SUBLANE * max(1, 4 // itemsize)

    flat = x.reshape(-1)
    rows = _cdiv(n, LANE)
    rows_p = _round_up(rows, pack_rows)
    n_padded = rows_p * LANE
    # Pad only to the sublane-pack granularity (never to tile multiples); zero padding
    # is safe for the max(|x|) reduction.
    if n_padded != n:
        flat = jnp.pad(flat, (0, n_padded - n))
    x2d = flat.reshape(rows_p, LANE)

    if rows_p <= fused_max_rows:
        out2d = _fused_call(x2d, orig_dtype)
    else:
        out2d = _two_pass_call(x2d, orig_dtype, rows_p, max_tile_rows, pack_rows)

    out_flat = out2d.reshape(-1)
    if n_padded != n:
        out_flat = out_flat[:n]
    return out_flat.reshape(orig_shape)


if __name__ == "__main__":
    key = jax.random.PRNGKey(0)
    # surface_laplacian: (batch=2, channels=4, H=16, W=16), NCHW convention
    x = jax.random.normal(key, (2, 4, 16, 16), dtype=jnp.float32) * 3.0

    out = jax.block_until_ready(laplacian_shader_pallas(x))            # fused path
    ref = (1.0 - x / jnp.max(jnp.abs(x))) * 0.5
    assert out.shape == x.shape and out.dtype == x.dtype
    assert jnp.allclose(out, ref, atol=1e-6, rtol=1e-6), "fused path mismatch"

    # Also exercise the two-pass tiled path (partial last block + tail padding) with a
    # small, non-aligned shape by forcing tiny tiles.
    x2 = jax.random.normal(jax.random.PRNGKey(1), (3, 3, 19, 17), dtype=jnp.float32)
    out2 = jax.block_until_ready(
        laplacian_shader_pallas(x2, fused_max_rows=0, max_tile_rows=16))
    ref2 = (1.0 - x2 / jnp.max(jnp.abs(x2))) * 0.5
    assert out2.shape == x2.shape and out2.dtype == x2.dtype
    assert jnp.allclose(out2, ref2, atol=1e-6, rtol=1e-6), "two-pass path mismatch"

    print("KERNEL_OK")
</pallas_src>

<mosaic_0001>
module attributes {stable_mosaic.version = 11 : i64} {
  func.func @_fused_kernel(%arg0: i32, %arg1: memref<16x128xf32, #tpu.memory_space<vmem>>, %arg2: memref<16x128xf32, #tpu.memory_space<vmem>>) attributes {dimension_semantics = [#tpu.dimension_semantics<arbitrary>], iteration_bounds = array<i64: 1>, scalar_prefetch = 0 : i64, scratch_operands = 0 : i64, tpu.core_type = #tpu.core_type<tc>, window_params = [{pipeline_mode = #tpu.pipeline_mode<synchronous>, transform_indices = @transform_0, window_bounds = array<i64: 16, 128>}, {pipeline_mode = #tpu.pipeline_mode<synchronous>, transform_indices = @transform_1, window_bounds = array<i64: 16, 128>}]} {
    %c0 = arith.constant 0 : index
    %c0_0 = arith.constant 0 : index
    %0 = vector.load %arg1[%c0, %c0_0] : memref<16x128xf32, #tpu.memory_space<vmem>>, vector<16x128xf32>
    %1 = math.absf %0 : vector<16x128xf32>
    %2 = vector.shape_cast %1 : vector<16x128xf32> to vector<1x16x128xf32>
    %cst = arith.constant dense<0xFF800000> : vector<1xf32>
    %3 = vector.multi_reduction <maximumf>, %2, %cst [1, 2] : vector<1x16x128xf32> to vector<1xf32>
    %4 = vector.shape_cast %3 : vector<1xf32> to vector<1x1x1xf32>
    %5 = vector.extract %4[0, 0, 0] : f32 from vector<1x1x1xf32>
    %cst_1 = arith.constant 5.000000e-01 : f32
    %6 = arith.divf %cst_1, %5 : f32
    %7 = vector.broadcast %6 : f32 to vector<16x128xf32>
    %8 = arith.mulf %0, %7 : vector<16x128xf32>
    %cst_2 = arith.constant 5.000000e-01 : f32
    %9 = vector.broadcast %cst_2 : f32 to vector<16x128xf32>
    %10 = arith.subf %9, %8 : vector<16x128xf32>
    %c0_3 = arith.constant 0 : index
    %c0_4 = arith.constant 0 : index
    %11 = vector.load %arg2[%c0_3, %c0_4] : memref<16x128xf32, #tpu.memory_space<vmem>>, vector<16x128xf32>
    tpu.vector_store %arg2[%c0_3, %c0_4], %10 {strides = array<i32>} : memref<16x128xf32, #tpu.memory_space<vmem>>, vector<16x128xf32>,
    return
  }
  func.func @transform_0(%arg0: i32) -> (i32, i32) {
    %c0_i32 = arith.constant 0 : i32
    %c0_i32_0 = arith.constant 0 : i32
    %c0_i32_1 = arith.constant 0 : i32
    return %c0_i32, %c0_i32_0 : i32, i32
  }
  func.func @transform_1(%arg0: i32) -> (i32, i32) {
    %c0_i32 = arith.constant 0 : i32
    %c0_i32_0 = arith.constant 0 : i32
    %c0_i32_1 = arith.constant 0 : i32
    return %c0_i32, %c0_i32_0 : i32, i32
  }
}

</mosaic_0001>

<llo_original>
// kernel: tpu_custom_call.1
$region0: #{tpu_custom_call.1}
  #allocation0 [shape = 'u32[]', space=smem, size = 0x4, offset = 0x4, fixed_abs, tag = 'smem constant byte address 0x4 - core index']
  #allocation1 [shape = 'u32[144,128]{1,0:T(1,128)}', space=vmem, size = 0x12000, scoped, tag = 'internal scratch']
  %s0 = inlined_call_operand.hbm [shape: f32[16,128], index: 0, kind: input, shape index: {}]
  %s1 = inlined_call_operand.hbm [shape: f32[16,128], index: 1, kind: output, shape index: {}]
  %s2 = sld [smem:[#allocation0]]
  $region18: #{tpu_custom_call.1} parent=0
    _
  %s4 = ssub.s32 1, %s2
  %s5 = scalar_select 0, %s4, %s2
  $region1: #{tpu_custom_call.1} parent=0
    #allocation2 [shape = 'u8[8192]{0}', space=vmem, size = 0x2000, scoped, tag = 'input window, operand 0, single buffered']
    #allocation3 [shape = 's32[1]{0}', space=sflag, size = 0x4, scoped, tag = 'scoped memory for tpu_custom_call.1']
    #allocation4 [shape = 's32[1]{0}', space=sflag, size = 0x4, scoped, tag = 'scoped memory for tpu_custom_call.1']
    #allocation5 [shape = 'u8[8192]{0}', space=vmem, size = 0x2000, scoped, tag = 'output window, operand 0, single buffered']
    %6 = vsyncpa [#allocation3], 0
    %7 = vsyncpa [#allocation4], 0
    // Predicated region
    $region2: #{tpu_custom_call.1} parent=1 // pred_check
      _
    $region3: #{tpu_custom_call.1} parent=1 // pred_check_branch
      %9 = sbr.rel (0) target = $region5
    $region4: #{tpu_custom_call.1} parent=1 // pred_region
      %s11 = ssub.s32 256, 256
      %12 = vsyncadd [#allocation3], %s11
      %s13 = sshll.u32 [#allocation2], 4
      %s14 = int_to_ptr.vmem [resolvable:$true] %s13
      %19 = dma.hbm_to_vmem [thread:$0]  %s0, 256, %s14, [#allocation3], 128, 128, 8
    $region5: #{tpu_custom_call.1} parent=1 // pred_fallthru
      _
    // Predicated region
    $region6: #{tpu_custom_call.1} parent=1 // pred_check
      _
    $region7: #{tpu_custom_call.1} parent=1 // pred_check_branch
      %21 = sbr.rel (0) target = $region9
    $region8: #{tpu_custom_call.1} parent=1 // pred_region
      %22 = dma.done [#allocation3], 256
    $region9: #{tpu_custom_call.1} parent=1 // pred_fallthru
      _
    %v23 = vld [vmem:[#allocation2] sm:$0xff]
    %v24 = vld [vmem:[#allocation2 + $0x8] sm:$0xff]
    %v25 = vand.u32 2147483647, %v23
    %v26 = vand.u32 2147483647, %v24
    %v27 = vmax.f32 %v25, %v26
    %28 = vmax.xlane.f32.xlu0 %v27
    %v29 = vpop.xlane.xlu0 %28
    %v30 = vrot.slane %v29, 4
    %v31 = vmax.f32 %v29, %v30
    %v32 = vrot.slane %v31, 2
    %v33 = vmax.f32 %v31, %v32
    %v34 = vrot.slane %v33, 1
    %v35 = vmax.f32 %v33, %v34
    %s36 = vtos %v35
    %v37 = vstv %s36
    %v38 = vrcp.pop %v37
    %s39 = vtos %v38
    %s40 = smul.f32 0.5, %s39
    %v41 = vstv %s40
    %v42 = vmul.f32 %v23, %v41
    %v43 = vmul.f32 %v24, %v41
    %v44 = vsub.f32 0.5, %v42
    %v45 = vsub.f32 0.5, %v43
    %46 = vst [vmem:[#allocation5] sm:$0xff] %v44
    %47 = vst [vmem:[#allocation5 + $0x8] sm:$0xff] %v45
    // Predicated region
    $region10: #{tpu_custom_call.1} parent=1 // pred_check
      _
    $region11: #{tpu_custom_call.1} parent=1 // pred_check_branch
      %49 = sbr.rel (0) target = $region13
    $region12: #{tpu_custom_call.1} parent=1 // pred_region
      %s51 = ssub.s32 256, 256
      %52 = vsyncadd [#allocation4], %s51
      %s53 = sshll.u32 [#allocation5], 4
      %s54 = int_to_ptr.vmem [resolvable:$true] %s53
      %59 = dma.vmem_to_hbm [thread:$0]  %s54, 256, %s1, [#allocation4], 128, 128, 8
    $region13: #{tpu_custom_call.1} parent=1 // pred_fallthru
      _
    // Predicated region
    $region14: #{tpu_custom_call.1} parent=1 // pred_check
      _
    $region15: #{tpu_custom_call.1} parent=1 // pred_check_branch
      %61 = sbr.rel (0) target = $region17
    $region16: #{tpu_custom_call.1} parent=1 // pred_region
      %62 = dma.done [#allocation4], 256
    $region17: #{tpu_custom_call.1} parent=1 // pred_fallthru
      _
    %63 = vsyncpa [#allocation3], 1
    %64 = vsyncpa [#allocation4], 1

</llo_original>
